<compile_context>
chip_gen: v7x
topology: tpu7x:2x2x1
jax: 0.10.0
libtpu: 0.0.40
codegen_flags: <defaults>
</compile_context>

<pallas_src>
import functools

import jax
import jax.numpy as jnp
from jax import lax
from jax.experimental import pallas as pl
from jax.experimental.pallas import tpu as pltpu


def _generator_kernel(q_ref, a_ref, d_ref, gw1_ref, gw2_ref, idx_ref, w_ref,
                      loss_ref, *, n, k, inv_temperature, eps):
    # q/a/d: [D, K*N]  (lane index = kk*N + nn), reduction axis D on sublanes.
    q = q_ref[...]
    a = a_ref[...]
    d = d_ref[...]

    # Cosine similarity over D with a shared d-norm and a single rsqrt per pair.
    #   num / max(|x| * |y|, eps)  ==  num * rsqrt(max(sxx * syy, eps^2))
    sdd = jnp.sum(d * d, axis=0, keepdims=True)            # [1, K*N] (shared)
    sqq = jnp.sum(q * q, axis=0, keepdims=True)
    saa = jnp.sum(a * a, axis=0, keepdims=True)
    nqd = jnp.sum(q * d, axis=0, keepdims=True)
    nad = jnp.sum(a * d, axis=0, keepdims=True)
    eps2 = eps * eps
    o1 = nqd * lax.rsqrt(jnp.maximum(sqq * sdd, eps2))      # [1, K*N]
    o2 = nad * lax.rsqrt(jnp.maximum(saa * sdd, eps2))      # [1, K*N]

    # Weight by G_v1 / G_v2 (already tiled to the same (k, n) lane order).
    weighted = o1 * gw1_ref[...] + o2 * gw2_ref[...]        # [1, K*N]

    # Per-candidate score: sum over the K groups (static lane slices, no MXU).
    score = weighted[:, 0:n]
    for kk in range(1, k):
        score = score + weighted[:, kk * n:(kk + 1) * n]
    score = score * inv_temperature                         # [1, N]

    # Numerically-stable log-softmax over all N candidates (lane reductions).
    m = jnp.max(score)
    shifted = score - m
    logz = jnp.log(jnp.sum(jnp.exp(shifted)))
    logp = shifted - logz                                   # [1, N] log-probs

    # Gather log-probs at `indexes` with a VPU mask + lane reduce.
    idx = idx_ref[...]                                      # [M, 1] int32
    iota_n = lax.broadcasted_iota(jnp.int32, (idx.shape[0], n), 1)
    sel = jnp.where(iota_n == idx, logp, 0.0)               # [M, N]
    gathered = jnp.sum(sel, axis=1, keepdims=True)          # [M, 1]

    # w = -(reward * importance) / M was folded in the wrapper.
    loss_ref[...] = jnp.reshape(jnp.sum(gathered * w_ref[...]), (1, 1))


def generator_loss(samples, g_v1, g_v2, indexes, reward, importance,
                   temperature):
    samples = samples.astype(jnp.float32)
    N, _, D, K = samples.shape
    M = int(indexes.shape[0])

    # Layout plumbing only: [N, D, K] -> [D, K*N]  (lane index = k*N + n).
    def to_dk_n(x):
        return jnp.transpose(x, (1, 2, 0)).reshape(D, K * N)

    q = to_dk_n(samples[:, 0])
    a = to_dk_n(samples[:, 1])
    d = to_dk_n(samples[:, 3])                 # slot 2 never touched

    gw1 = jnp.repeat(g_v1.astype(jnp.float32), N).reshape(1, K * N)
    gw2 = jnp.repeat(g_v2.astype(jnp.float32), N).reshape(1, K * N)
    idx = indexes.reshape(M, 1).astype(jnp.int32)
    w = (-(reward.reshape(-1).astype(jnp.float32)
           * importance.reshape(-1).astype(jnp.float32)) / M).reshape(M, 1)

    kern = functools.partial(_generator_kernel, n=N, k=K,
                             inv_temperature=1.0 / float(temperature),
                             eps=1e-6)
    vmem = pl.BlockSpec(memory_space=pltpu.MemorySpace.VMEM)
    out = pl.pallas_call(
        kern,
        out_shape=jax.ShapeDtypeStruct((1, 1), jnp.float32),
        in_specs=[vmem] * 7,
        out_specs=vmem,
    )(q, a, d, gw1, gw2, idx, w)
    return out[0, 0]


def _reference_loss(samples, g_v1, g_v2, indexes, reward, importance,
                    temperature):
    q, a, d = samples[:, 0], samples[:, 1], samples[:, 3]

    def cos(x, y):
        num = jnp.sum(x * y, axis=1)
        nx = jnp.sqrt(jnp.sum(x * x, axis=1))
        ny = jnp.sqrt(jnp.sum(y * y, axis=1))
        return num / jnp.maximum(nx * ny, 1e-6)

    o1, o2 = cos(q, d), cos(a, d)
    score = (o1 @ g_v1 + o2 @ g_v2) / temperature
    probs = jax.nn.softmax(score.reshape(1, -1), axis=-1).reshape(-1)
    gathered = probs[indexes]
    return -jnp.mean(jnp.log(gathered) * reward.reshape(-1)
                     * importance.reshape(-1))


if __name__ == "__main__":
    key = jax.random.PRNGKey(0)
    N, D, K, M = 8, 32, 8, 8          # candidates, cosine dim, G_v dim, #indexes
    temperature = 0.5

    k1, k2, k3, k4, k5, k6 = jax.random.split(key, 6)
    samples = jax.random.normal(k1, (N, 4, D, K), dtype=jnp.float32)
    g_v1 = 0.1 * jax.random.normal(k2, (K,), dtype=jnp.float32)
    g_v2 = 0.1 * jax.random.normal(k3, (K,), dtype=jnp.float32)
    indexes = jax.random.randint(k4, (M,), 0, N, dtype=jnp.int32)
    reward = jax.random.uniform(k5, (M,), dtype=jnp.float32) + 0.1
    importance = jax.random.uniform(k6, (M,), dtype=jnp.float32) + 0.1

    loss = generator_loss(samples, g_v1, g_v2, indexes, reward, importance,
                          temperature)
    jax.block_until_ready(loss)

    ref = _reference_loss(samples, g_v1, g_v2, indexes, reward, importance,
                          temperature)
    assert jnp.allclose(loss, ref, rtol=1e-5, atol=1e-5), (loss, ref)
    print("KERNEL_OK")
</pallas_src>

<mosaic_0001>
module attributes {stable_mosaic.version = 11 : i64} {
  func.func @_generator_kernel(%arg0: memref<32x64xf32, #tpu.memory_space<vmem>>, %arg1: memref<32x64xf32, #tpu.memory_space<vmem>>, %arg2: memref<32x64xf32, #tpu.memory_space<vmem>>, %arg3: memref<1x64xf32, #tpu.memory_space<vmem>>, %arg4: memref<1x64xf32, #tpu.memory_space<vmem>>, %arg5: memref<8x1xi32, #tpu.memory_space<vmem>>, %arg6: memref<8x1xf32, #tpu.memory_space<vmem>>, %arg7: memref<1x1xf32, #tpu.memory_space<vmem>>) attributes {dimension_semantics = [], scalar_prefetch = 0 : i64, scratch_operands = 0 : i64, tpu.core_type = #tpu.core_type<tc>} {
    %c0 = arith.constant 0 : index
    %c0_0 = arith.constant 0 : index
    %0 = vector.load %arg0[%c0, %c0_0] : memref<32x64xf32, #tpu.memory_space<vmem>>, vector<32x64xf32>
    %c0_1 = arith.constant 0 : index
    %c0_2 = arith.constant 0 : index
    %1 = vector.load %arg1[%c0_1, %c0_2] : memref<32x64xf32, #tpu.memory_space<vmem>>, vector<32x64xf32>
    %c0_3 = arith.constant 0 : index
    %c0_4 = arith.constant 0 : index
    %2 = vector.load %arg2[%c0_3, %c0_4] : memref<32x64xf32, #tpu.memory_space<vmem>>, vector<32x64xf32>
    %3 = arith.mulf %2, %2 : vector<32x64xf32>
    %cst = arith.constant dense<0.000000e+00> : vector<64xf32>
    %4 = vector.multi_reduction <add>, %3, %cst [0] : vector<32x64xf32> to vector<64xf32>
    %5 = vector.shape_cast %4 : vector<64xf32> to vector<1x64xf32>
    %6 = arith.mulf %0, %0 : vector<32x64xf32>
    %cst_5 = arith.constant dense<0.000000e+00> : vector<64xf32>
    %7 = vector.multi_reduction <add>, %6, %cst_5 [0] : vector<32x64xf32> to vector<64xf32>
    %8 = vector.shape_cast %7 : vector<64xf32> to vector<1x64xf32>
    %9 = arith.mulf %1, %1 : vector<32x64xf32>
    %cst_6 = arith.constant dense<0.000000e+00> : vector<64xf32>
    %10 = vector.multi_reduction <add>, %9, %cst_6 [0] : vector<32x64xf32> to vector<64xf32>
    %11 = vector.shape_cast %10 : vector<64xf32> to vector<1x64xf32>
    %12 = arith.mulf %0, %2 : vector<32x64xf32>
    %cst_7 = arith.constant dense<0.000000e+00> : vector<64xf32>
    %13 = vector.multi_reduction <add>, %12, %cst_7 [0] : vector<32x64xf32> to vector<64xf32>
    %14 = vector.shape_cast %13 : vector<64xf32> to vector<1x64xf32>
    %15 = arith.mulf %1, %2 : vector<32x64xf32>
    %cst_8 = arith.constant dense<0.000000e+00> : vector<64xf32>
    %16 = vector.multi_reduction <add>, %15, %cst_8 [0] : vector<32x64xf32> to vector<64xf32>
    %17 = vector.shape_cast %16 : vector<64xf32> to vector<1x64xf32>
    %18 = arith.mulf %8, %5 : vector<1x64xf32>
    %cst_9 = arith.constant 9.99999996E-13 : f32
    %19 = vector.broadcast %cst_9 : f32 to vector<1x64xf32>
    %20 = arith.maximumf %18, %19 : vector<1x64xf32>
    %21 = math.rsqrt %20 : vector<1x64xf32>
    %22 = arith.mulf %14, %21 : vector<1x64xf32>
    %23 = arith.mulf %11, %5 : vector<1x64xf32>
    %cst_10 = arith.constant 9.99999996E-13 : f32
    %24 = vector.broadcast %cst_10 : f32 to vector<1x64xf32>
    %25 = arith.maximumf %23, %24 : vector<1x64xf32>
    %26 = math.rsqrt %25 : vector<1x64xf32>
    %27 = arith.mulf %17, %26 : vector<1x64xf32>
    %c0_11 = arith.constant 0 : index
    %c0_12 = arith.constant 0 : index
    %28 = vector.load %arg3[%c0_11, %c0_12] : memref<1x64xf32, #tpu.memory_space<vmem>>, vector<1x64xf32>
    %29 = arith.mulf %22, %28 : vector<1x64xf32>
    %c0_13 = arith.constant 0 : index
    %c0_14 = arith.constant 0 : index
    %30 = vector.load %arg4[%c0_13, %c0_14] : memref<1x64xf32, #tpu.memory_space<vmem>>, vector<1x64xf32>
    %31 = arith.mulf %27, %30 : vector<1x64xf32>
    %32 = arith.addf %29, %31 : vector<1x64xf32>
    %33 = vector.extract_strided_slice %32 {offsets = [0, 0], sizes = [1, 8], strides = [1, 1]} : vector<1x64xf32> to vector<1x8xf32>
    %34 = vector.extract_strided_slice %32 {offsets = [0, 8], sizes = [1, 8], strides = [1, 1]} : vector<1x64xf32> to vector<1x8xf32>
    %35 = arith.addf %33, %34 : vector<1x8xf32>
    %36 = vector.extract_strided_slice %32 {offsets = [0, 16], sizes = [1, 8], strides = [1, 1]} : vector<1x64xf32> to vector<1x8xf32>
    %37 = arith.addf %35, %36 : vector<1x8xf32>
    %38 = vector.extract_strided_slice %32 {offsets = [0, 24], sizes = [1, 8], strides = [1, 1]} : vector<1x64xf32> to vector<1x8xf32>
    %39 = arith.addf %37, %38 : vector<1x8xf32>
    %40 = vector.extract_strided_slice %32 {offsets = [0, 32], sizes = [1, 8], strides = [1, 1]} : vector<1x64xf32> to vector<1x8xf32>
    %41 = arith.addf %39, %40 : vector<1x8xf32>
    %42 = vector.extract_strided_slice %32 {offsets = [0, 40], sizes = [1, 8], strides = [1, 1]} : vector<1x64xf32> to vector<1x8xf32>
    %43 = arith.addf %41, %42 : vector<1x8xf32>
    %44 = vector.extract_strided_slice %32 {offsets = [0, 48], sizes = [1, 8], strides = [1, 1]} : vector<1x64xf32> to vector<1x8xf32>
    %45 = arith.addf %43, %44 : vector<1x8xf32>
    %46 = vector.extract_strided_slice %32 {offsets = [0, 56], sizes = [1, 8], strides = [1, 1]} : vector<1x64xf32> to vector<1x8xf32>
    %47 = arith.addf %45, %46 : vector<1x8xf32>
    %cst_15 = arith.constant 2.000000e+00 : f32
    %48 = vector.broadcast %cst_15 : f32 to vector<1x8xf32>
    %49 = arith.mulf %47, %48 : vector<1x8xf32>
    %50 = vector.shape_cast %49 : vector<1x8xf32> to vector<1x1x8xf32>
    %cst_16 = arith.constant dense<0xFF800000> : vector<1xf32>
    %51 = vector.multi_reduction <maximumf>, %50, %cst_16 [1, 2] : vector<1x1x8xf32> to vector<1xf32>
    %52 = vector.shape_cast %51 : vector<1xf32> to vector<1x1x1xf32>
    %53 = vector.extract %52[0, 0, 0] : f32 from vector<1x1x1xf32>
    %54 = vector.broadcast %53 : f32 to vector<1x8xf32>
    %55 = arith.subf %49, %54 : vector<1x8xf32>
    %56 = math.exp %55 : vector<1x8xf32>
    %57 = vector.shape_cast %56 : vector<1x8xf32> to vector<1x1x8xf32>
    %cst_17 = arith.constant dense<0.000000e+00> : vector<1xf32>
    %58 = vector.multi_reduction <add>, %57, %cst_17 [1, 2] : vector<1x1x8xf32> to vector<1xf32>
    %59 = vector.shape_cast %58 : vector<1xf32> to vector<1x1x1xf32>
    %60 = vector.extract %59[0, 0, 0] : f32 from vector<1x1x1xf32>
    %61 = math.log %60 : f32
    %62 = vector.broadcast %61 : f32 to vector<1x8xf32>
    %63 = arith.subf %55, %62 : vector<1x8xf32>
    %c0_18 = arith.constant 0 : index
    %c0_19 = arith.constant 0 : index
    %64 = vector.load %arg5[%c0_18, %c0_19] : memref<8x1xi32, #tpu.memory_space<vmem>>, vector<8x1xi32>
    %65 = tpu.iota {dimensions = array<i32: 1>} : vector<8x8xi32>
    %66 = vector.broadcast %64 : vector<8x1xi32> to vector<8x8xi32>
    %67 = arith.cmpi eq, %65, %66 : vector<8x8xi32>
    %cst_20 = arith.constant 0.000000e+00 : f32
    %68 = vector.shape_cast %63 : vector<1x8xf32> to vector<1x8xf32>
    %69 = vector.broadcast %68 : vector<1x8xf32> to vector<8x8xf32>
    %70 = vector.broadcast %cst_20 : f32 to vector<8x8xf32>
    %71 = arith.select %67, %69, %70 : vector<8x8xi1>, vector<8x8xf32>
    %cst_21 = arith.constant dense<0.000000e+00> : vector<8xf32>
    %72 = vector.multi_reduction <add>, %71, %cst_21 [1] : vector<8x8xf32> to vector<8xf32>
    %73 = vector.shape_cast %72 : vector<8xf32> to vector<8x1xf32>
    %c0_22 = arith.constant 0 : index
    %c0_23 = arith.constant 0 : index
    %74 = vector.load %arg6[%c0_22, %c0_23] : memref<8x1xf32, #tpu.memory_space<vmem>>, vector<8x1xf32>
    %75 = arith.mulf %73, %74 : vector<8x1xf32>
    %76 = vector.shape_cast %75 : vector<8x1xf32> to vector<1x8x1xf32>
    %cst_24 = arith.constant dense<0.000000e+00> : vector<1xf32>
    %77 = vector.multi_reduction <add>, %76, %cst_24 [1, 2] : vector<1x8x1xf32> to vector<1xf32>
    %78 = vector.shape_cast %77 : vector<1xf32> to vector<1x1x1xf32>
    %79 = vector.extract %78[0, 0, 0] : f32 from vector<1x1x1xf32>
    %80 = vector.broadcast %79 : f32 to vector<1x1xf32>
    %c0_25 = arith.constant 0 : index
    %c0_26 = arith.constant 0 : index
    %81 = vector.load %arg7[%c0_25, %c0_26] : memref<1x1xf32, #tpu.memory_space<vmem>>, vector<1x1xf32>
    tpu.vector_store %arg7[%c0_25, %c0_26], %80 {strides = array<i32>} : memref<1x1xf32, #tpu.memory_space<vmem>>, vector<1x1xf32>,
    return
  }
}

</mosaic_0001>

<llo_original>
// kernel: tpu_custom_call.1
$region0: #{tpu_custom_call.1}
  #allocation0 [shape = 'u32[]', space=smem, size = 0x4, offset = 0x4, fixed_abs, tag = 'smem constant byte address 0x4 - core index']
  #allocation1 [shape = 'u32[144,128]{1,0:T(1,128)}', space=vmem, size = 0x12000, scoped, tag = 'internal scratch']
  %s0 = inlined_call_operand.hbm [shape: f32[32,64], index: 0, kind: input, shape index: {}]
  %s1 = inlined_call_operand.hbm [shape: f32[32,64], index: 1, kind: input, shape index: {}]
  %s2 = inlined_call_operand.hbm [shape: f32[32,64], index: 2, kind: input, shape index: {}]
  %s3 = inlined_call_operand.vmem [shape: f32[1,64], index: 3, kind: input, shape index: {}]
  %s4 = inlined_call_operand.vmem [shape: f32[1,64], index: 4, kind: input, shape index: {}]
  %s5 = inlined_call_operand.vmem [shape: s32[8,1], index: 5, kind: input, shape index: {}]
  %s6 = inlined_call_operand.vmem [shape: f32[8,1], index: 6, kind: input, shape index: {}]
  %s7 = inlined_call_operand.hbm [shape: f32[1,1], index: 7, kind: output, shape index: {}]
  %s8 = sld [smem:[#allocation0]]
  $region50: #{tpu_custom_call.1} parent=0
    _
  %s10 = ssub.s32 1, %s8
  %s11 = scalar_select 0, %s10, %s8
  $region1: #{tpu_custom_call.1} parent=0
    #allocation2 [shape = 'u8[16384]{0}', space=vmem, size = 0x4000, scoped, tag = 'input window, operand 0, single buffered']
    #allocation3 [shape = 's32[1]{0}', space=sflag, size = 0x4, scoped, tag = 'scoped memory for tpu_custom_call.1']
    #allocation4 [shape = 's32[1]{0}', space=sflag, size = 0x4, scoped, tag = 'scoped memory for tpu_custom_call.1']
    #allocation5 [shape = 'u8[16384]{0}', space=vmem, size = 0x4000, scoped, tag = 'input window, operand 1, single buffered']
    #allocation6 [shape = 's32[1]{0}', space=sflag, size = 0x4, scoped, tag = 'scoped memory for tpu_custom_call.1']
    #allocation7 [shape = 'u8[16384]{0}', space=vmem, size = 0x4000, scoped, tag = 'input window, operand 2, single buffered']
    #allocation8 [shape = 'u8[512]{0}', space=vmem, size = 0x400, scoped, tag = 'output window, operand 0, single buffered']
    %12 = vsyncpa [#allocation3], 0
    %13 = vsyncpa [#allocation6], 0
    %14 = vsyncpa [#allocation4], 0
    // Predicated region
    $region2: #{tpu_custom_call.1} parent=1 // pred_check
      _
    $region3: #{tpu_custom_call.1} parent=1 // pred_check_branch
      %16 = sbr.rel (0) target = $region5
    $region4: #{tpu_custom_call.1} parent=1 // pred_region
      %s18 = ssub.s32 512, 512
      %19 = vsyncadd [#allocation3], %s18
      %s20 = sshll.u32 [#allocation2], 4
      %s21 = int_to_ptr.vmem [resolvable:$true] %s20
      %26 = dma.hbm_to_vmem [thread:$0]  %s0, 512, %s21, [#allocation3], 128, 128, 8
    $region5: #{tpu_custom_call.1} parent=1 // pred_fallthru
      _
    // Predicated region
    $region6: #{tpu_custom_call.1} parent=1 // pred_check
      _
    $region7: #{tpu_custom_call.1} parent=1 // pred_check_branch
      %28 = sbr.rel (0) target = $region9
    $region8: #{tpu_custom_call.1} parent=1 // pred_region
      %s30 = ssub.s32 512, 512
      %31 = vsyncadd [#allocation6], %s30
      %s32 = sshll.u32 [#allocation5], 4
      %s33 = int_to_ptr.vmem [resolvable:$true] %s32
      %38 = dma.hbm_to_vmem [thread:$0]  %s1, 512, %s33, [#allocation6], 128, 128, 8
    $region9: #{tpu_custom_call.1} parent=1 // pred_fallthru
      _
    // Predicated region
    $region10: #{tpu_custom_call.1} parent=1 // pred_check
      _
    $region11: #{tpu_custom_call.1} parent=1 // pred_check_branch
      %40 = sbr.rel (0) target = $region13
    $region12: #{tpu_custom_call.1} parent=1 // pred_region
      %s42 = ssub.s32 512, 512
      %43 = vsyncadd [#allocation6], %s42
      %s44 = sshll.u32 [#allocation7], 4
      %s45 = int_to_ptr.vmem [resolvable:$true] %s44
      %50 = dma.hbm_to_vmem [thread:$0]  %s2, 512, %s45, [#allocation6], 128, 128, 8
    $region13: #{tpu_custom_call.1} parent=1 // pred_fallthru
      _
    // Predicated region
    $region14: #{tpu_custom_call.1} parent=1 // pred_check
      _
    $region15: #{tpu_custom_call.1} parent=1 // pred_check_branch
      %52 = sbr.rel (0) target = $region17
    $region16: #{tpu_custom_call.1} parent=1 // pred_region
      _
    $region17: #{tpu_custom_call.1} parent=1 // pred_fallthru
      _
    // Predicated region
    $region18: #{tpu_custom_call.1} parent=1 // pred_check
      _
    $region19: #{tpu_custom_call.1} parent=1 // pred_check_branch
      %54 = sbr.rel (0) target = $region21
    $region20: #{tpu_custom_call.1} parent=1 // pred_region
      _
    $region21: #{tpu_custom_call.1} parent=1 // pred_fallthru
      _
    // Predicated region
    $region22: #{tpu_custom_call.1} parent=1 // pred_check
      _
    $region23: #{tpu_custom_call.1} parent=1 // pred_check_branch
      %56 = sbr.rel (0) target = $region25
    $region24: #{tpu_custom_call.1} parent=1 // pred_region
      _
    $region25: #{tpu_custom_call.1} parent=1 // pred_fallthru
      _
    // Predicated region
    $region26: #{tpu_custom_call.1} parent=1 // pred_check
      _
    $region27: #{tpu_custom_call.1} parent=1 // pred_check_branch
      %58 = sbr.rel (0) target = $region29
    $region28: #{tpu_custom_call.1} parent=1 // pred_region
      _
    $region29: #{tpu_custom_call.1} parent=1 // pred_fallthru
      _
    // Predicated region
    $region30: #{tpu_custom_call.1} parent=1 // pred_check
      _
    $region31: #{tpu_custom_call.1} parent=1 // pred_check_branch
      %60 = sbr.rel (0) target = $region33
    $region32: #{tpu_custom_call.1} parent=1 // pred_region
      %61 = dma.done [#allocation3], 512
    $region33: #{tpu_custom_call.1} parent=1 // pred_fallthru
      _
    // Predicated region
    $region34: #{tpu_custom_call.1} parent=1 // pred_check
      _
    $region35: #{tpu_custom_call.1} parent=1 // pred_check_branch
      %63 = sbr.rel (0) target = $region37
    $region36: #{tpu_custom_call.1} parent=1 // pred_region
      %64 = dma.done [#allocation6], 512
    $region37: #{tpu_custom_call.1} parent=1 // pred_fallthru
      _
    // Predicated region
    $region38: #{tpu_custom_call.1} parent=1 // pred_check
      _
    $region39: #{tpu_custom_call.1} parent=1 // pred_check_branch
      %66 = sbr.rel (0) target = $region41
    $region40: #{tpu_custom_call.1} parent=1 // pred_region
      %67 = dma.done [#allocation6], 512
    $region41: #{tpu_custom_call.1} parent=1 // pred_fallthru
      _
    %v68 = vld [vmem:[#allocation2] sm:$0xff]
    %v69 = vld [vmem:[#allocation2 + $0x8] sm:$0xff]
    %v70 = vld [vmem:[#allocation2 + $0x10] sm:$0xff]
    %v71 = vld [vmem:[#allocation2 + $0x18] sm:$0xff]
    %v72 = vld [vmem:[#allocation5] sm:$0xff]
    %v73 = vld [vmem:[#allocation5 + $0x8] sm:$0xff]
    %v74 = vld [vmem:[#allocation5 + $0x10] sm:$0xff]
    %v75 = vld [vmem:[#allocation5 + $0x18] sm:$0xff]
    %v76 = vld [vmem:[#allocation7] sm:$0xff]
    %v77 = vld [vmem:[#allocation7 + $0x8] sm:$0xff]
    %v78 = vld [vmem:[#allocation7 + $0x10] sm:$0xff]
    %v79 = vld [vmem:[#allocation7 + $0x18] sm:$0xff]
    %v80 = vmul.f32 %v76, %v76
    %v81 = vmul.f32 %v77, %v77
    %v82 = vmul.f32 %v78, %v78
    %v83 = vmul.f32 %v79, %v79
    %vm84 = vcmask 523264
    %v85 = vsel %vm84, %v80, 0.0
    %v86 = vsel %vm84, %v81, 0.0
    %v87 = vadd.f32 %v85, %v86
    %v88 = vsel %vm84, %v82, 0.0
    %v89 = vadd.f32 %v87, %v88
    %v90 = vsel %vm84, %v83, 0.0
    %v91 = vadd.f32 %v89, %v90
    %v92 = vrot.slane %v91, 4
    %v93 = vadd.f32 %v91, %v92
    %v94 = vrot.slane %v93, 2
    %v95 = vadd.f32 %v93, %v94
    %v96 = vrot.slane %v95, 1
    %v97 = vadd.f32 %v95, %v96
    %v98 = vmul.f32 %v68, %v68
    %v99 = vmul.f32 %v69, %v69
    %v100 = vmul.f32 %v70, %v70
    %v101 = vmul.f32 %v71, %v71
    %v102 = vsel %vm84, %v98, 0.0
    %v103 = vsel %vm84, %v99, 0.0
    %v104 = vadd.f32 %v102, %v103
    %v105 = vsel %vm84, %v100, 0.0
    %v106 = vadd.f32 %v104, %v105
    %v107 = vsel %vm84, %v101, 0.0
    %v108 = vadd.f32 %v106, %v107
    %v109 = vrot.slane %v108, 4
    %v110 = vadd.f32 %v108, %v109
    %v111 = vrot.slane %v110, 2
    %v112 = vadd.f32 %v110, %v111
    %v113 = vrot.slane %v112, 1
    %v114 = vadd.f32 %v112, %v113
    %v115 = vmul.f32 %v72, %v72
    %v116 = vmul.f32 %v73, %v73
    %v117 = vmul.f32 %v74, %v74
    %v118 = vmul.f32 %v75, %v75
    %v119 = vsel %vm84, %v115, 0.0
    %v120 = vsel %vm84, %v116, 0.0
    %v121 = vadd.f32 %v119, %v120
    %v122 = vsel %vm84, %v117, 0.0
    %v123 = vadd.f32 %v121, %v122
    %v124 = vsel %vm84, %v118, 0.0
    %v125 = vadd.f32 %v123, %v124
    %v126 = vrot.slane %v125, 4
    %v127 = vadd.f32 %v125, %v126
    %v128 = vrot.slane %v127, 2
    %v129 = vadd.f32 %v127, %v128
    %v130 = vrot.slane %v129, 1
    %v131 = vadd.f32 %v129, %v130
    %v132 = vmul.f32 %v68, %v76
    %v133 = vmul.f32 %v69, %v77
    %v134 = vmul.f32 %v70, %v78
    %v135 = vmul.f32 %v71, %v79
    %v136 = vsel %vm84, %v132, 0.0
    %v137 = vsel %vm84, %v133, 0.0
    %v138 = vadd.f32 %v136, %v137
    %v139 = vsel %vm84, %v134, 0.0
    %v140 = vadd.f32 %v138, %v139
    %v141 = vsel %vm84, %v135, 0.0
    %v142 = vadd.f32 %v140, %v141
    %v143 = vrot.slane %v142, 4
    %v144 = vadd.f32 %v142, %v143
    %v145 = vrot.slane %v144, 2
    %v146 = vadd.f32 %v144, %v145
    %v147 = vrot.slane %v146, 1
    %v148 = vadd.f32 %v146, %v147
    %v149 = vmul.f32 %v72, %v76
    %v150 = vmul.f32 %v73, %v77
    %v151 = vmul.f32 %v74, %v78
    %v152 = vmul.f32 %v75, %v79
    %v153 = vsel %vm84, %v149, 0.0
    %v154 = vsel %vm84, %v150, 0.0
    %v155 = vadd.f32 %v153, %v154
    %v156 = vsel %vm84, %v151, 0.0
    %v157 = vadd.f32 %v155, %v156
    %v158 = vsel %vm84, %v152, 0.0
    %v159 = vadd.f32 %v157, %v158
    %v160 = vrot.slane %v159, 4
    %v161 = vadd.f32 %v159, %v160
    %v162 = vrot.slane %v161, 2
    %v163 = vadd.f32 %v161, %v162
    %v164 = vrot.slane %v163, 1
    %v165 = vadd.f32 %v163, %v164
    %v166 = vmul.f32 %v114, %v97
    %v167 = vmax.f32 %v166, 1e-12
    %v168 = vrsqrt.pop %v167
    %v169 = vmul.f32 %v148, %v168
    %v170 = vmul.f32 %v131, %v97
    %v171 = vmax.f32 %v170, 1e-12
    %v172 = vrsqrt.pop %v171
    %v173 = vmul.f32 %v165, %v172
    %v174 = vld [vmem:[%s3] sm:$0x1]
    %v175 = vmul.f32 %v169, %v174
    %v176 = vld [vmem:[%s4] sm:$0x1]
    %v177 = vmul.f32 %v173, %v176
    %v178 = vadd.f32 %v175, %v177
    %180 = vrot.lane.b32.xlu0 %v178, 120
    %v181 = vpop.permute.xlu0 %180
    %v183 = vadd.f32 %v178, %v181
    %184 = vrot.lane.b32.xlu0 %v178, 112
    %v185 = vpop.permute.xlu0 %184
    %v187 = vadd.f32 %v183, %v185
    %188 = vrot.lane.b32.xlu0 %v178, 104
    %v189 = vpop.permute.xlu0 %188
    %v191 = vadd.f32 %v187, %v189
    %192 = vrot.lane.b32.xlu0 %v178, 96
    %v193 = vpop.permute.xlu0 %192
    %v195 = vadd.f32 %v191, %v193
    %196 = vrot.lane.b32.xlu0 %v178, 88
    %v197 = vpop.permute.xlu0 %196
    %v199 = vadd.f32 %v195, %v197
    %200 = vrot.lane.b32.xlu0 %v178, 80
    %v201 = vpop.permute.xlu0 %200
    %v203 = vadd.f32 %v199, %v201
    %204 = vrot.lane.b32.xlu0 %v178, 72
    %v205 = vpop.permute.xlu0 %204
    %v207 = vadd.f32 %v203, %v205
    %v208 = vmul.f32 %v207, 2.0
    %vm209 = vcmask 57344
    %v210 = vsel %vm209, %v208, -inf
    %211 = vmax.xlane.f32.xlu0 %v210
    %v212 = vpop.xlane.xlu0 %211
    %v213 = vrot.slane %v212, 4
    %v214 = vmax.f32 %v212, %v213
    %v215 = vrot.slane %v214, 2
    %v216 = vmax.f32 %v214, %v215
    %v217 = vrot.slane %v216, 1
    %v218 = vmax.f32 %v216, %v217
    %s219 = vtos %v218
    %v220 = vstv %s219
    %v221 = vsub.f32 %v208, %v220
    %v222 = vmul.f32 %v221, 1.442695
    %v223 = vpow.pop %v222
    %v224 = vsel %vm209, %v223, 0.0
    %225 = vadd.xlane.f32.xlu0 %v224
    %v226 = vpop.xlane.xlu0 %225
    %v227 = vrot.slane %v226, 4
    %v228 = vadd.f32 %v226, %v227
    %v229 = vrot.slane %v228, 2
    %v230 = vadd.f32 %v228, %v229
    %v231 = vrot.slane %v230, 1
    %v232 = vadd.f32 %v230, %v231
    %s233 = vtos %v232
    %v234 = vstv %s233
    %v235 = vlog2.pop %v234
    %v236 = vmul.f32 %v235, 0.6931472
    %s237 = vtos %v236
    %v238 = vstv %s237
    %v239 = vsub.f32 %v221, %v238
    %v240 = vld [vmem:[%s5] sm:$0xff]
    %v241 = vlaneseq
    %v242 = vand.u32 %v241, 127
    %243 = vset.pattern.permute.xlu0 0
    %244 = vperm.xlu0 %243, %v240
    %v245 = vpop.permute.xlu0 %244
    %vm246 = vcmp.eq.s32.totalorder %v242, %v245
    %v247 = vlaneseq
    %v248 = vshrl.u32 %v247, 7
    %v249 = vsub.s32 0, %v248
    %v250 = vrot.slane %v239, %v249
    %v251 = vsel %vm246, %v250, 0.0
    %vm252 = vcmask 64512
    %v253 = vsel %vm252, %v251, 0.0
    %254 = vadd.xlane.f32.xlu0 %v253
    %v255 = vpop.xlane.xlu0 %254
    %v256 = vld [vmem:[%s6] sm:$0xff]
    %v257 = vmul.f32 %v255, %v256
    %vm258 = vcmask 7168
    %v259 = vsel %vm258, %v257, 0.0
    %260 = vadd.xlane.f32.xlu0 %v259
    %v261 = vpop.xlane.xlu0 %260
    %v262 = vrot.slane %v261, 4
    %v263 = vadd.f32 %v261, %v262
    %v264 = vrot.slane %v263, 2
    %v265 = vadd.f32 %v263, %v264
    %v266 = vrot.slane %v265, 1
    %v267 = vadd.f32 %v265, %v266
    %s268 = vtos %v267
    %v269 = vstv %s268
    %vm270 = vcmask 0
    %271 = vst.msk [vmem:[#allocation8] sm:$0x1] %vm270, %v269
    // Predicated region
    $region42: #{tpu_custom_call.1} parent=1 // pred_check
      _
    $region43: #{tpu_custom_call.1} parent=1 // pred_check_branch
      %273 = sbr.rel (0) target = $region45
    $region44: #{tpu_custom_call.1} parent=1 // pred_region
      %s275 = ssub.s32 16, 16
      %276 = vsyncadd [#allocation4], %s275
      %s278 = sshll.u32 [#allocation8], 4
      %s279 = int_to_ptr.vmem [resolvable:$true] %s278
      %281 = dma.vmem_to_hbm [thread:$0]  %s279, 16, %s7, [#allocation4]
    $region45: #{tpu_custom_call.1} parent=1 // pred_fallthru
      _
    // Predicated region
    $region46: #{tpu_custom_call.1} parent=1 // pred_check
      _
    $region47: #{tpu_custom_call.1} parent=1 // pred_check_branch
      %283 = sbr.rel (0) target = $region49
    $region48: #{tpu_custom_call.1} parent=1 // pred_region
      %284 = dma.done [#allocation4], 16
    $region49: #{tpu_custom_call.1} parent=1 // pred_fallthru
      _
    %285 = vsyncpa [#allocation3], 1
    %286 = vsyncpa [#allocation6], 1
    %287 = vsyncpa [#allocation4], 1

</llo_original>
